<compile_context>
chip_gen: v7x
topology: tpu7x:2x2x1
jax: 0.10.0
libtpu: 0.0.40
codegen_flags: <defaults>
</compile_context>

<pallas_src>
import functools

import jax
import jax.numpy as jnp
from jax.experimental import pallas as pl
from jax.experimental.pallas import tpu as pltpu


def _round_up(x: int, m: int) -> int:
    return (x + m - 1) // m * m


def _vmem_capacity_bytes() -> int:
    try:
        return int(pltpu.get_tpu_info().vmem_capacity_bytes)
    except Exception:
        return 64 * 2 ** 20  # conservative (v7x-sized) fallback


def _fused_kernel(xm_ref, a_ref, xr_ref, b_ref, o_ref, *, res_scale):
    """Single-K-block step: out = res_scale * x_res + x_mxu @ A_h + b_h."""
    y = jnp.dot(xm_ref[...], a_ref[...], preferred_element_type=jnp.float32)
    out = res_scale * xr_ref[...].astype(jnp.float32) + y + b_ref[...]
    o_ref[...] = out.astype(o_ref.dtype)


def _ktiled_kernel(xm_ref, a_ref, xr_ref, b_ref, o_ref, acc_ref, *, res_scale):
    """K-tiled step: accumulate partial matmuls, fuse the epilogue at last k."""
    k = pl.program_id(2)

    @pl.when(k == 0)
    def _():
        acc_ref[...] = jnp.zeros_like(acc_ref)

    acc_ref[...] += jnp.dot(xm_ref[...], a_ref[...],
                            preferred_element_type=jnp.float32)

    @pl.when(k == pl.num_programs(2) - 1)
    def _():
        out = (res_scale * xr_ref[...].astype(jnp.float32)
               + acc_ref[...] + b_ref[...])
        o_ref[...] = out.astype(o_ref.dtype)


def antisymmetric_residual_layer(x, w, bias, *, h, gamma=1e-4,
                                 mxu_dtype=jnp.bfloat16,
                                 block_b=None, block_n=512):
    """out = x + h * ((x @ (W - W.T - gamma*I).T) + b)

    x: [B, width]; w: [width, width]; bias: [width] (or None).
    mxu_dtype: dtype of the matmul operands (default bf16: MXU-native on
    v5e/v6e/v7x, halves the A_h stream). Residual, bias, and accumulation
    are always f32. Pass jnp.float32 for a bit-exact reference path.
    """
    B, width = x.shape
    assert w.shape == (width, width)
    if bias is None:
        bias = jnp.zeros((width,), jnp.float32)
    assert bias.shape == (width,)

    out_dtype = x.dtype
    a_dtype = jnp.dtype(mxu_dtype) if mxu_dtype is not None else jnp.dtype(x.dtype)
    mxu_isz = a_dtype.itemsize
    res_isz = jnp.dtype(x.dtype).itemsize
    out_isz = jnp.dtype(out_dtype).itemsize

    # ---- host-side, input-independent precompute (hoisted out of the kernel)
    a_h = (h * (w.T - w)).astype(a_dtype)                      # [width, width]
    b_h = (h * bias.astype(jnp.float32)).reshape(1, width)     # [1, width] f32
    res_scale = float(1.0 - h * gamma)

    # ---- per-generation VMEM budget (~80% of capacity -> compiler headroom)
    budget = (_vmem_capacity_bytes() * 4) // 5
    headroom = 4 * 2 ** 20

    if block_b is None:
        # Larger batch tile where VMEM allows (v5e/v6e: 128 MiB; v7x: 64 MiB).
        block_b = 512 if budget >= 80 * 2 ** 20 else 256

    # ---- lane/sublane-dense tile sizes
    bm = min(_round_up(block_b, 16), _round_up(B, 16))   # mult of 16 (bf16 pack)
    Bp = _round_up(B, bm)
    Wp128 = _round_up(width, 128)
    bn = min(_round_up(block_n, 128), Wp128)             # keep MXU N-dim full
    Wp = _round_up(Wp128, bn)                            # pad width UP, never shrink bn

    def vmem_need(tk):
        return (2 * bm * tk * mxu_isz      # x (MXU operand), double-buffered
                + 2 * tk * bn * mxu_isz    # A_h column block
                + 2 * bm * bn * res_isz    # f32 residual block
                + 2 * bn * 4               # bias block
                + 2 * bm * bn * out_isz    # output block
                + bm * bn * 4)             # f32 accumulator scratch

    tk = Wp
    if vmem_need(tk) + headroom > budget:
        fitting = [d for d in range(128, Wp, 128)
                   if Wp % d == 0 and vmem_need(d) + headroom <= budget]
        tk = max(fitting) if fitting else 128
    kgrid = Wp // tk

    vmem_limit = int(min(budget, max(vmem_need(tk) + headroom, 32 * 2 ** 20)))

    # ---- padded operands (zero-padded rows/cols contribute nothing)
    x_res_p = jnp.pad(x, ((0, Bp - B), (0, Wp - width)))         # f32 residual
    x_mxu_p = x_res_p if x_res_p.dtype == a_dtype else x_res_p.astype(a_dtype)
    a_p = jnp.pad(a_h, ((0, Wp - width), (0, Wp - width)))
    b_p = jnp.pad(b_h, ((0, 0), (0, Wp - width)))

    I, J = Bp // bm, Wp // bn
    a_stream = Wp * Wp * mxu_isz
    x_stream = Bp * Wp * mxu_isz

    if kgrid == 1:
        kernel = functools.partial(_fused_kernel, res_scale=res_scale)
        # Re-stream the cheaper operand: put the heavier one's block index on
        # the outer axis so it is invariant along the inner axis (DMA skipped).
        reuse_a = (I - 1) * a_stream >= (J - 1) * x_stream
        if reuse_a:
            grid = (J, I)
            xm_spec = pl.BlockSpec((bm, Wp), lambda j, i: (i, 0))
            a_spec = pl.BlockSpec((Wp, bn), lambda j, i: (0, j))
            xr_spec = pl.BlockSpec((bm, bn), lambda j, i: (i, j))
            b_spec = pl.BlockSpec((1, bn), lambda j, i: (0, j))
            o_spec = pl.BlockSpec((bm, bn), lambda j, i: (i, j))
            a_bytes, xm_bytes = a_stream, J * x_stream
        else:
            grid = (I, J)
            xm_spec = pl.BlockSpec((bm, Wp), lambda i, j: (i, 0))
            a_spec = pl.BlockSpec((Wp, bn), lambda i, j: (0, j))
            xr_spec = pl.BlockSpec((bm, bn), lambda i, j: (i, j))
            b_spec = pl.BlockSpec((1, bn), lambda i, j: (0, j))
            o_spec = pl.BlockSpec((bm, bn), lambda i, j: (i, j))
            a_bytes, xm_bytes = I * a_stream, x_stream
        scratch_shapes = ()
        dim_sem = ("parallel", "parallel")
    else:
        # Very large width: K-reduction grid axis with f32 accumulator scratch.
        kernel = functools.partial(_ktiled_kernel, res_scale=res_scale)
        grid = (I, J, kgrid)
        xm_spec = pl.BlockSpec((bm, tk), lambda i, j, k: (i, k))
        a_spec = pl.BlockSpec((tk, bn), lambda i, j, k: (k, j))
        xr_spec = pl.BlockSpec((bm, bn), lambda i, j, k: (i, j))
        b_spec = pl.BlockSpec((1, bn), lambda i, j, k: (0, j))
        o_spec = pl.BlockSpec((bm, bn), lambda i, j, k: (i, j))
        scratch_shapes = (pltpu.VMEM((bm, bn), jnp.float32),)
        dim_sem = ("parallel", "parallel", "arbitrary")
        a_bytes, xm_bytes = I * a_stream, J * x_stream

    cost = pl.CostEstimate(
        flops=int(2 * Bp * Wp * Wp),
        transcendentals=0,
        bytes_accessed=int(a_bytes + xm_bytes
                           + Bp * Wp * res_isz      # f32 residual read
                           + Wp * 4                 # bias read
                           + Bp * Wp * out_isz))    # output write

    out_p = pl.pallas_call(
        kernel,
        out_shape=jax.ShapeDtypeStruct((Bp, Wp), out_dtype),
        grid=grid,
        in_specs=[xm_spec, a_spec, xr_spec, b_spec],
        out_specs=o_spec,
        scratch_shapes=scratch_shapes,
        compiler_params=pltpu.CompilerParams(
            dimension_semantics=dim_sem,
            vmem_limit_bytes=vmem_limit,
        ),
        cost_estimate=cost,
    )(x_mxu_p, a_p, x_res_p, b_p)

    return out_p[:B, :width]


if __name__ == "__main__":
    # Small shapes consistent with the module (a dense layer of `width` units).
    batch, width = 8, 32
    h, gamma = 0.1, 1e-4

    key = jax.random.PRNGKey(0)
    kx, kw, kb = jax.random.split(key, 3)

    x = jax.random.normal(kx, (batch, width), dtype=jnp.float32)
    w = jax.random.normal(kw, (width, width), dtype=jnp.float32) * 0.1
    bias = jax.random.normal(kb, (width,), dtype=jnp.float32) * 0.1

    # Pure-JAX reference (mirrors the PyTorch forward exactly).
    a_full = w - w.T - gamma * jnp.eye(width, dtype=jnp.float32)
    ref = x + h * (x @ a_full.T + bias)

    # Exact f32 MXU-operand path (bit-level reference of the kernel math).
    out_f32 = antisymmetric_residual_layer(
        x, w, bias, h=h, gamma=gamma, mxu_dtype=jnp.float32)
    out_f32 = jax.block_until_ready(out_f32)
    assert out_f32.shape == (batch, width)
    assert jnp.allclose(out_f32, ref, atol=1e-5, rtol=1e-5), "f32 path mismatch"

    # Default path: bf16 MXU operands, f32 accumulate/residual/bias.
    # Width-scaled tolerance (bf16 rounding error grows ~sqrt(width)*h).
    out_def = antisymmetric_residual_layer(x, w, bias, h=h, gamma=gamma)
    out_def = jax.block_until_ready(out_def)
    atol = 2e-2 * h * max(1.0, float(width) ** 0.5)
    assert jnp.allclose(out_def, ref, atol=atol, rtol=2e-2), "bf16 path mismatch"

    print("KERNEL_OK")
</pallas_src>

<mosaic_0001>
module attributes {stable_mosaic.version = 11 : i64} {
  func.func @_fused_kernel(%arg0: i32, %arg1: i32, %arg2: memref<16x128xf32, #tpu.memory_space<vmem>>, %arg3: memref<128x128xf32, #tpu.memory_space<vmem>>, %arg4: memref<16x128xf32, #tpu.memory_space<vmem>>, %arg5: memref<1x128xf32, #tpu.memory_space<vmem>>, %arg6: memref<16x128xf32, #tpu.memory_space<vmem>>) attributes {dimension_semantics = [#tpu.dimension_semantics<parallel>, #tpu.dimension_semantics<parallel>], iteration_bounds = array<i64: 1, 1>, scalar_prefetch = 0 : i64, scratch_operands = 0 : i64, tpu.core_type = #tpu.core_type<tc>, window_params = [{transform_indices = @transform_0, window_bounds = array<i64: 16, 128>}, {transform_indices = @transform_1, window_bounds = array<i64: 128, 128>}, {transform_indices = @transform_2, window_bounds = array<i64: 16, 128>}, {transform_indices = @transform_3, window_bounds = array<i64: 1, 128>}, {transform_indices = @transform_4, window_bounds = array<i64: 16, 128>}]} {
    %c0 = arith.constant 0 : index
    %c0_0 = arith.constant 0 : index
    %0 = vector.load %arg2[%c0, %c0_0] : memref<16x128xf32, #tpu.memory_space<vmem>>, vector<16x128xf32>
    %c0_1 = arith.constant 0 : index
    %c0_2 = arith.constant 0 : index
    %1 = vector.load %arg3[%c0_1, %c0_2] : memref<128x128xf32, #tpu.memory_space<vmem>>, vector<128x128xf32>
    %cst = arith.constant dense<0.000000e+00> : vector<16x128xf32>
    %2 = tpu.matmul %0, %1, %cst {dimension_numbers = #tpu.dot_dimension_numbers<[1], [0], [0], [1], [0, 0, 1, 1], [], []>} : vector<16x128xf32>, vector<128x128xf32>, vector<16x128xf32> -> vector<16x128xf32>
    %c0_3 = arith.constant 0 : index
    %c0_4 = arith.constant 0 : index
    %3 = vector.load %arg4[%c0_3, %c0_4] : memref<16x128xf32, #tpu.memory_space<vmem>>, vector<16x128xf32>
    %cst_5 = arith.constant 0.999989986 : f32
    %4 = vector.broadcast %cst_5 : f32 to vector<16x128xf32>
    %5 = arith.mulf %4, %3 : vector<16x128xf32>
    %6 = arith.addf %5, %2 : vector<16x128xf32>
    %c0_6 = arith.constant 0 : index
    %c0_7 = arith.constant 0 : index
    %7 = vector.load %arg5[%c0_6, %c0_7] : memref<1x128xf32, #tpu.memory_space<vmem>>, vector<1x128xf32>
    %8 = vector.broadcast %7 : vector<1x128xf32> to vector<16x128xf32>
    %9 = arith.addf %6, %8 : vector<16x128xf32>
    %c0_8 = arith.constant 0 : index
    %c0_9 = arith.constant 0 : index
    %10 = vector.load %arg6[%c0_8, %c0_9] : memref<16x128xf32, #tpu.memory_space<vmem>>, vector<16x128xf32>
    tpu.vector_store %arg6[%c0_8, %c0_9], %9 {strides = array<i32>} : memref<16x128xf32, #tpu.memory_space<vmem>>, vector<16x128xf32>,
    return
  }
  func.func @transform_0(%arg0: i32, %arg1: i32) -> (i32, i32) {
    %c0_i32 = arith.constant 0 : i32
    %c0_i32_0 = arith.constant 0 : i32
    return %arg1, %c0_i32 : i32, i32
  }
  func.func @transform_1(%arg0: i32, %arg1: i32) -> (i32, i32) {
    %c0_i32 = arith.constant 0 : i32
    %c0_i32_0 = arith.constant 0 : i32
    return %c0_i32, %arg0 : i32, i32
  }
  func.func @transform_2(%arg0: i32, %arg1: i32) -> (i32, i32) {
    %c0_i32 = arith.constant 0 : i32
    return %arg1, %arg0 : i32, i32
  }
  func.func @transform_3(%arg0: i32, %arg1: i32) -> (i32, i32) {
    %c0_i32 = arith.constant 0 : i32
    %c0_i32_0 = arith.constant 0 : i32
    return %c0_i32, %arg0 : i32, i32
  }
  func.func @transform_4(%arg0: i32, %arg1: i32) -> (i32, i32) {
    %c0_i32 = arith.constant 0 : i32
    return %arg1, %arg0 : i32, i32
  }
}

</mosaic_0001>

<llo_original>
// kernel: tpu_custom_call.1
$region0: #{tpu_custom_call.1}
  #allocation0 [shape = 'u32[]', space=smem, size = 0x4, offset = 0x4, fixed_abs, tag = 'smem constant byte address 0x4 - core index']
  #allocation1 [shape = 'u32[144,128]{1,0:T(1,128)}', space=vmem, size = 0x12000, scoped, tag = 'internal scratch']
  %s0 = inlined_call_operand.hbm [shape: f32[16,128], index: 0, kind: input, shape index: {}]
  %s1 = inlined_call_operand.hbm [shape: f32[128,128], index: 1, kind: input, shape index: {}]
  %s2 = inlined_call_operand.hbm [shape: f32[16,128], index: 2, kind: input, shape index: {}]
  %s3 = inlined_call_operand.vmem [shape: f32[1,128], index: 3, kind: input, shape index: {}]
  %s4 = inlined_call_operand.hbm [shape: f32[16,128], index: 4, kind: output, shape index: {}]
  %s5 = sld [smem:[#allocation0]]
  $region38: #{tpu_custom_call.1} parent=0
    _
  %s7 = ssub.s32 1, %s5
  %s8 = scalar_select 0, %s7, %s5
  $region1: #{tpu_custom_call.1} parent=0
    #allocation2 [shape = 'u8[8192]{0}', space=vmem, size = 0x2000, scoped, tag = 'input window, operand 0, single buffered']
    #allocation3 [shape = 's32[1]{0}', space=sflag, size = 0x4, scoped, tag = 'scoped memory for tpu_custom_call.1']
    #allocation4 [shape = 's32[1]{0}', space=sflag, size = 0x4, scoped, tag = 'scoped memory for tpu_custom_call.1']
    #allocation5 [shape = 'u8[65536]{0}', space=vmem, size = 0x10000, scoped, tag = 'input window, operand 1, single buffered']
    #allocation6 [shape = 's32[1]{0}', space=sflag, size = 0x4, scoped, tag = 'scoped memory for tpu_custom_call.1']
    #allocation7 [shape = 'u8[8192]{0}', space=vmem, size = 0x2000, scoped, tag = 'input window, operand 2, single buffered']
    #allocation8 [shape = 'u8[8192]{0}', space=vmem, size = 0x2000, scoped, tag = 'output window, operand 0, single buffered']
    %9 = vsyncpa [#allocation3], 0
    %10 = vsyncpa [#allocation6], 0
    %11 = vsyncpa [#allocation4], 0
    // Predicated region
    $region2: #{tpu_custom_call.1} parent=1 // pred_check
      _
    $region3: #{tpu_custom_call.1} parent=1 // pred_check_branch
      %13 = sbr.rel (0) target = $region5
    $region4: #{tpu_custom_call.1} parent=1 // pred_region
      %s15 = ssub.s32 256, 256
      %16 = vsyncadd [#allocation3], %s15
      %s17 = sshll.u32 [#allocation2], 4
      %s18 = int_to_ptr.vmem [resolvable:$true] %s17
      %23 = dma.hbm_to_vmem [thread:$0]  %s0, 256, %s18, [#allocation3], 128, 128, 8
    $region5: #{tpu_custom_call.1} parent=1 // pred_fallthru
      _
    // Predicated region
    $region6: #{tpu_custom_call.1} parent=1 // pred_check
      _
    $region7: #{tpu_custom_call.1} parent=1 // pred_check_branch
      %25 = sbr.rel (0) target = $region9
    $region8: #{tpu_custom_call.1} parent=1 // pred_region
      %s27 = ssub.s32 2048, 2048
      %28 = vsyncadd [#allocation6], %s27
      %s29 = sshll.u32 [#allocation5], 4
      %s30 = int_to_ptr.vmem [resolvable:$true] %s29
      %35 = dma.hbm_to_vmem [thread:$0]  %s1, 2048, %s30, [#allocation6], 128, 128, 8
    $region9: #{tpu_custom_call.1} parent=1 // pred_fallthru
      _
    // Predicated region
    $region10: #{tpu_custom_call.1} parent=1 // pred_check
      _
    $region11: #{tpu_custom_call.1} parent=1 // pred_check_branch
      %37 = sbr.rel (0) target = $region13
    $region12: #{tpu_custom_call.1} parent=1 // pred_region
      %s39 = ssub.s32 256, 256
      %40 = vsyncadd [#allocation6], %s39
      %s41 = sshll.u32 [#allocation7], 4
      %s42 = int_to_ptr.vmem [resolvable:$true] %s41
      %47 = dma.hbm_to_vmem [thread:$0]  %s2, 256, %s42, [#allocation6], 128, 128, 8
    $region13: #{tpu_custom_call.1} parent=1 // pred_fallthru
      _
    // Predicated region
    $region14: #{tpu_custom_call.1} parent=1 // pred_check
      _
    $region15: #{tpu_custom_call.1} parent=1 // pred_check_branch
      %49 = sbr.rel (0) target = $region17
    $region16: #{tpu_custom_call.1} parent=1 // pred_region
      _
    $region17: #{tpu_custom_call.1} parent=1 // pred_fallthru
      _
    // Predicated region
    $region18: #{tpu_custom_call.1} parent=1 // pred_check
      _
    $region19: #{tpu_custom_call.1} parent=1 // pred_check_branch
      %51 = sbr.rel (0) target = $region21
    $region20: #{tpu_custom_call.1} parent=1 // pred_region
      %52 = dma.done [#allocation3], 256
    $region21: #{tpu_custom_call.1} parent=1 // pred_fallthru
      _
    // Predicated region
    $region22: #{tpu_custom_call.1} parent=1 // pred_check
      _
    $region23: #{tpu_custom_call.1} parent=1 // pred_check_branch
      %54 = sbr.rel (0) target = $region25
    $region24: #{tpu_custom_call.1} parent=1 // pred_region
      %55 = dma.done [#allocation6], 2048
    $region25: #{tpu_custom_call.1} parent=1 // pred_fallthru
      _
    // Predicated region
    $region26: #{tpu_custom_call.1} parent=1 // pred_check
      _
    $region27: #{tpu_custom_call.1} parent=1 // pred_check_branch
      %57 = sbr.rel (0) target = $region29
    $region28: #{tpu_custom_call.1} parent=1 // pred_region
      %58 = dma.done [#allocation6], 256
    $region29: #{tpu_custom_call.1} parent=1 // pred_fallthru
      _
    %v59 = vld [vmem:[#allocation2] sm:$0xff]
    %v60 = vld [vmem:[#allocation2 + $0x8] sm:$0xff]
    %v61 = vld [vmem:[#allocation5] sm:$0xff]
    %v62 = vld [vmem:[#allocation5 + $0x8] sm:$0xff]
    %v63 = vld [vmem:[#allocation5 + $0x10] sm:$0xff]
    %v64 = vld [vmem:[#allocation5 + $0x18] sm:$0xff]
    %v65 = vld [vmem:[#allocation5 + $0x20] sm:$0xff]
    %v66 = vld [vmem:[#allocation5 + $0x28] sm:$0xff]
    %v67 = vld [vmem:[#allocation5 + $0x30] sm:$0xff]
    %v68 = vld [vmem:[#allocation5 + $0x38] sm:$0xff]
    %v69 = vld [vmem:[#allocation5 + $0x40] sm:$0xff]
    %v70 = vld [vmem:[#allocation5 + $0x48] sm:$0xff]
    %v71 = vld [vmem:[#allocation5 + $0x50] sm:$0xff]
    %v72 = vld [vmem:[#allocation5 + $0x58] sm:$0xff]
    %v73 = vld [vmem:[#allocation5 + $0x60] sm:$0xff]
    %v74 = vld [vmem:[#allocation5 + $0x68] sm:$0xff]
    %v75 = vld [vmem:[#allocation5 + $0x70] sm:$0xff]
    %v76 = vld [vmem:[#allocation5 + $0x78] sm:$0xff]
    %77 = vmatprep.subr.mxu0 0.0
    %78 = vmatpush1.msra.mxu0 %v61
    %79 = vmatprep.subr.mxu0 0.0
    %80 = vmatpush1.msra.mxu0 %v62
    %81 = vmatprep.subr.mxu0 0.0
    %82 = vmatpush1.msra.mxu0 %v63
    %83 = vmatprep.subr.mxu0 0.0
    %84 = vmatpush1.msra.mxu0 %v64
    %85 = vmatprep.subr.mxu0 0.0
    %86 = vmatpush1.msra.mxu0 %v65
    %87 = vmatprep.subr.mxu0 0.0
    %88 = vmatpush1.msra.mxu0 %v66
    %89 = vmatprep.subr.mxu0 0.0
    %90 = vmatpush1.msra.mxu0 %v67
    %91 = vmatprep.subr.mxu0 0.0
    %92 = vmatpush1.msra.mxu0 %v68
    %93 = vmatprep.subr.mxu0 0.0
    %94 = vmatpush1.msra.mxu0 %v69
    %95 = vmatprep.subr.mxu0 0.0
    %96 = vmatpush1.msra.mxu0 %v70
    %97 = vmatprep.subr.mxu0 0.0
    %98 = vmatpush1.msra.mxu0 %v71
    %99 = vmatprep.subr.mxu0 0.0
    %100 = vmatpush1.msra.mxu0 %v72
    %101 = vmatprep.subr.mxu0 0.0
    %102 = vmatpush1.msra.mxu0 %v73
    %103 = vmatprep.subr.mxu0 0.0
    %104 = vmatpush1.msra.mxu0 %v74
    %105 = vmatprep.subr.mxu0 0.0
    %106 = vmatpush1.msra.mxu0 %v75
    %107 = vmatprep.subr.mxu0 0.0
    %108 = vmatpush1.msra.mxu0 %v76
    %109 = vmatprep.subr.mxu0 0.0
    %110 = vmatpush1.msra.mxu0 0.0
    %111 = vmatprep.subr.mxu0 0.0
    %112 = vmatpush1.msra.mxu0 0.0
    %113 = vmatprep.subr.mxu0 0.0
    %114 = vmatpush1.msra.mxu0 0.0
    %115 = vmatprep.subr.mxu0 0.0
    %116 = vmatpush1.msra.mxu0 0.0
    %117 = vmatprep.subr.mxu0 0.0
    %118 = vmatpush1.msra.mxu0 0.0
    %119 = vmatprep.subr.mxu0 0.0
    %120 = vmatpush1.msra.mxu0 0.0
    %121 = vmatprep.subr.mxu0 0.0
    %122 = vmatpush1.msra.mxu0 0.0
    %123 = vmatprep.subr.mxu0 0.0
    %124 = vmatpush1.msra.mxu0 0.0
    %125 = vmatprep.subr.mxu0 0.0
    %126 = vmatpush1.msra.mxu0 0.0
    %127 = vmatprep.subr.mxu0 0.0
    %128 = vmatpush1.msra.mxu0 0.0
    %129 = vmatprep.subr.mxu0 0.0
    %130 = vmatpush1.msra.mxu0 0.0
    %131 = vmatprep.subr.mxu0 0.0
    %132 = vmatpush1.msra.mxu0 0.0
    %133 = vmatprep.subr.mxu0 0.0
    %134 = vmatpush1.msra.mxu0 0.0
    %135 = vmatprep.subr.mxu0 0.0
    %136 = vmatpush1.msra.mxu0 0.0
    %137 = vmatprep.subr.mxu0 0.0
    %138 = vmatpush1.msra.mxu0 0.0
    %139 = vmatprep.subr.mxu0 0.0
    %140 = vmatpush1.msra.mxu0 0.0
    %141 = vmatprep.mubr.f32.mxu0 0.0
    %142 = vmatmul.mubr.f32.gmra.mrb[0].mxu0 %v59
    %v143 = vpop.f32.mrb[0].mxu0
    %v144 = vadd.f32 0.0, %v143
    %v145 = vpop.f32.mrb[0].mxu0
    %146 = vmatprep.mubr.f32.mxu0 0.0
    %147 = vmatmul.mubr.f32.gmra.mrb[0].mxu0 %v60
    %v148 = vpop.f32.mrb[0].mxu0
    %v149 = vadd.f32 0.0, %v148
    %v150 = vpop.f32.mrb[0].mxu0
    %151 = vdwg.mxu0
    %v152 = vld [vmem:[#allocation7] sm:$0xff]
    %v153 = vld [vmem:[#allocation7 + $0x8] sm:$0xff]
    %v154 = vmul.f32 %v152, 0.99999
    %v155 = vmul.f32 %v153, 0.99999
    %v156 = vadd.f32 %v154, %v144
    %v157 = vadd.f32 %v155, %v149
    %v158 = vld [vmem:[%s3] sm:$0x1]
    %v160 = vlaneseq
    %v161 = vshrl.u32 %v160, 7
    %v162 = vsub.s32 0, %v161
    %v163 = vrot.slane %v158, %v162
    %v165 = vadd.f32 %v156, %v163
    %v166 = vadd.f32 %v157, %v163
    %167 = vst [vmem:[#allocation8] sm:$0xff] %v165
    %168 = vst [vmem:[#allocation8 + $0x8] sm:$0xff] %v166
    // Predicated region
    $region30: #{tpu_custom_call.1} parent=1 // pred_check
      _
    $region31: #{tpu_custom_call.1} parent=1 // pred_check_branch
      %170 = sbr.rel (0) target = $region33
    $region32: #{tpu_custom_call.1} parent=1 // pred_region
      %s172 = ssub.s32 256, 256
      %173 = vsyncadd [#allocation4], %s172
      %s174 = sshll.u32 [#allocation8], 4
      %s175 = int_to_ptr.vmem [resolvable:$true] %s174
      %180 = dma.vmem_to_hbm [thread:$0]  %s175, 256, %s4, [#allocation4], 128, 128, 8
    $region33: #{tpu_custom_call.1} parent=1 // pred_fallthru
      _
    // Predicated region
    $region34: #{tpu_custom_call.1} parent=1 // pred_check
      _
    $region35: #{tpu_custom_call.1} parent=1 // pred_check_branch
      %182 = sbr.rel (0) target = $region37
    $region36: #{tpu_custom_call.1} parent=1 // pred_region
      %183 = dma.done [#allocation4], 256
    $region37: #{tpu_custom_call.1} parent=1 // pred_fallthru
      _
    %184 = vsyncpa [#allocation3], 1
    %185 = vsyncpa [#allocation6], 1
    %186 = vsyncpa [#allocation4], 1

</llo_original>
